<compile_context>
chip_gen: v6e
topology: v6e:2x2x1
jax: 0.10.0
libtpu: 0.0.40
codegen_flags: <defaults>
</compile_context>

<pallas_src>
import functools

import jax
import jax.numpy as jnp
from jax import lax
from jax.experimental import pallas as pl
from jax.experimental.pallas import tpu as pltpu

_LANE = 128
_SUBLANE = 8
# (4096, 128) f32 tile = 2 MiB. logits + labels, double-buffered -> <= 8 MiB VMEM.
_MAX_TILE_ROWS = 4096


def _round_up(a, b):
    return ((a + b - 1) // b) * b


def _tensorcores_per_chip():
    """Best-effort: how many TensorCores one Pallas kernel can shard over."""
    try:
        kind = jax.devices()[0].device_kind.lower()
    except Exception:
        return 1
    # v7x exposes 2 TensorCores per chip; v5e / v6e have 1.
    if "v7" in kind or "tpu7" in kind:
        return 2
    return 1


def _masked_bce_kernel(x_ref, y_ref, sum_ref, cnt_ref, *,
                       ignore_index, n_blocks, last_rows, split, needs_oob_guard):
    if split:
        c = pl.program_id(0)                       # which TensorCore half
        i = pl.program_id(1)                       # block within the half (reduction axis)
        blk = c * pl.num_programs(1) + i           # logical (unclamped) block index
    else:
        i = pl.program_id(0)
        blk = i

    # Output blocks are resident across the reduction axis: init once per output block.
    @pl.when(i == 0)
    def _():
        sum_ref[...] = jnp.zeros(sum_ref.shape, sum_ref.dtype)
        cnt_ref[...] = jnp.zeros(cnt_ref.shape, cnt_ref.dtype)

    tile_rows = x_ref.shape[0]

    x = x_ref[...].astype(jnp.float32)   # per-tile cast; HBM traffic stays native dtype
    y = y_ref[...]                       # native label dtype (exact integer compare below)
    yf = y.astype(jnp.float32)

    valid = y != ignore_index

    # Numerically stable BCE-with-logits (matches torch.nn.BCEWithLogitsLoss):
    #   loss = max(x, 0) - x*y + log1p(exp(-|x|))
    # TODO(synk): on v7x, if EUP becomes the binding slot, the exp/log1p pair
    # could be evaluated in bf16 (keep f32 accumulation) for ~2x EUP throughput.
    loss = jnp.maximum(x, 0.0) - x * yf + jnp.log1p(jnp.exp(-jnp.abs(x)))

    def accum(mask):
        # Per-lane / per-sublane partial sums: pure VPU adds of whole vregs in
        # the hot loop; the tiny cross-lane reduction happens once, in the wrapper.
        l3 = jnp.where(mask, loss, 0.0).reshape(tile_rows // _SUBLANE, _SUBLANE, _LANE)
        c3 = jnp.where(mask, 1.0, 0.0).reshape(tile_rows // _SUBLANE, _SUBLANE, _LANE)
        sum_ref[...] += jnp.sum(l3, axis=0)
        cnt_ref[...] += jnp.sum(c3, axis=0)

    ragged = last_rows != tile_rows          # static Python bool
    if ragged:
        # Full interior blocks: label mask only -- no iota / bounds math.
        @pl.when(blk < n_blocks - 1)
        def _():
            accum(valid)

        # The last logical block hangs over the end of the array: mask rows
        # past it (its OOB VMEM contents are unspecified). This branch also
        # implicitly skips clamped out-of-range blocks (blk >= n_blocks).
        @pl.when(blk == n_blocks - 1)
        def _():
            row = lax.broadcasted_iota(jnp.int32, (tile_rows, 1), 0)
            accum(valid & (row < last_rows))
    elif needs_oob_guard:
        # Odd block count split across two cores: skip the clamped duplicate block.
        @pl.when(blk < n_blocks)
        def _():
            accum(valid)
    else:
        accum(valid)


def masked_bce_with_logits_loss(y_pr, y_gt, ignore_index=2):
    """y_pr: (N, 1, H, W) float logits; y_gt: (N, H, W) integer labels in {0, 1, ignore_index}."""
    x = y_pr.reshape((y_pr.shape[0],) + y_pr.shape[2:])   # squeeze(1)
    assert x.shape == y_gt.shape, (x.shape, y_gt.shape)

    n = x.size
    x_flat = x.reshape(-1)     # native dtype, no cast
    y_flat = y_gt.reshape(-1)  # native dtype, no cast (int8/uint8 upstream cuts label traffic)

    rows_needed = pl.cdiv(n, _LANE)
    if rows_needed <= _MAX_TILE_ROWS:
        # Small input: a single tile. Pad to a multiple of 8*128 so the in-kernel
        # (rows//8, 8, 128) reshape is valid; the pad copy is negligible here.
        n_pad = _round_up(n, _SUBLANE * _LANE)
        tile_rows = n_pad // _LANE
    else:
        # Large input: only pad to a multiple of 128 (needed by the lane-dense
        # reshape). The ragged last block is masked in-kernel, so no full-array
        # pad copy is triggered when n % 128 == 0 (the common segmentation case).
        n_pad = _round_up(n, _LANE)
        tile_rows = _MAX_TILE_ROWS

    if n_pad != n:
        # Labels padded with ignore_index -> padded elements are excluded by the
        # ordinary label test, no extra bounds math for them in the kernel.
        x_flat = jnp.pad(x_flat, (0, n_pad - n))
        y_flat = jnp.pad(y_flat, (0, n_pad - n), constant_values=ignore_index)

    rows = n_pad // _LANE
    # TODO(synk): if W % 128 != 0 this lane-dense reshape may lower to an XLA
    # relayout pass; blocking over the native (N*H, W) layout would avoid it.
    x2 = x_flat.reshape(rows, _LANE)
    y2 = y_flat.reshape(rows, _LANE)

    n_blocks = pl.cdiv(rows, tile_rows)
    last_rows = rows - (n_blocks - 1) * tile_rows

    # Only split across TensorCores on chips that actually have two (v7x); on
    # single-TC v5e / v6e the split would only add duplicate DMA + masking work.
    num_splits = 2 if (_tensorcores_per_chip() >= 2 and n_blocks >= 2) else 1

    if num_splits == 1:
        grid = (n_blocks,)
        in_map = lambda i: (i, 0)
        out_map = lambda i: (0, 0)
        dims = ("arbitrary",)
        needs_oob_guard = False
    else:
        bph = pl.cdiv(n_blocks, num_splits)        # blocks per core
        grid = (num_splits, bph)
        # Clamp so out-of-range logical blocks still read valid memory; their
        # contribution is skipped inside the kernel.
        in_map = lambda c, i: (jnp.minimum(c * bph + i, n_blocks - 1), 0)
        out_map = lambda c, i: (c, 0)
        core_par = getattr(pltpu, "CORE_PARALLEL", None)
        if core_par is not None:
            dims = (core_par, getattr(pltpu, "ARBITRARY", "arbitrary"))
        else:
            dims = ("parallel", "arbitrary")
        needs_oob_guard = (num_splits * bph) > n_blocks

    kernel = functools.partial(
        _masked_bce_kernel,
        ignore_index=ignore_index,
        n_blocks=n_blocks,
        last_rows=last_rows,
        split=(num_splits > 1),
        needs_oob_guard=needs_oob_guard,
    )

    out_rows = num_splits * _SUBLANE
    bytes_accessed = (x2.size * x2.dtype.itemsize
                      + y2.size * y2.dtype.itemsize
                      + 2 * out_rows * _LANE * 4)

    sum_out, cnt_out = pl.pallas_call(
        kernel,
        out_shape=(jax.ShapeDtypeStruct((out_rows, _LANE), jnp.float32),
                   jax.ShapeDtypeStruct((out_rows, _LANE), jnp.float32)),
        grid_spec=pltpu.PrefetchScalarGridSpec(
            num_scalar_prefetch=0,
            grid=grid,
            in_specs=[pl.BlockSpec((tile_rows, _LANE), in_map),
                      pl.BlockSpec((tile_rows, _LANE), in_map)],
            out_specs=(pl.BlockSpec((_SUBLANE, _LANE), out_map),
                       pl.BlockSpec((_SUBLANE, _LANE), out_map))),
        compiler_params=pltpu.CompilerParams(dimension_semantics=dims),
        cost_estimate=pl.CostEstimate(flops=6 * n,
                                      transcendentals=2 * n,
                                      bytes_accessed=bytes_accessed),
    )(x2, y2)

    total = jnp.sum(sum_out)
    cnt = jnp.sum(cnt_out)
    # mean over valid elements, or 0.0 if there are none
    return jnp.where(cnt > 0.0, total / jnp.maximum(cnt, 1.0), jnp.float32(0.0))


def _reference(y_pr, y_gt, ignore_index=2):
    x = y_pr.reshape((y_pr.shape[0],) + y_pr.shape[2:]).astype(jnp.float32)
    y = y_gt.astype(jnp.float32)
    valid = y_gt != ignore_index
    loss = jnp.maximum(x, 0.0) - x * y + jnp.log1p(jnp.exp(-jnp.abs(x)))
    cnt = jnp.sum(valid)
    total = jnp.sum(jnp.where(valid, loss, 0.0))
    return jnp.where(cnt > 0, total / jnp.maximum(cnt, 1), jnp.float32(0.0))


if __name__ == "__main__":
    key = jax.random.PRNGKey(0)
    k1, k2 = jax.random.split(key)

    N, H, W = 2, 16, 16
    y_pr = jax.random.normal(k1, (N, 1, H, W), dtype=jnp.float32)
    # labels in {0, 1, 2}; 2 == ignore_index
    y_gt = jax.random.randint(k2, (N, H, W), 0, 3).astype(jnp.int32)

    out = masked_bce_with_logits_loss(y_pr, y_gt, ignore_index=2)
    out = jax.block_until_ready(out)

    ref = _reference(y_pr, y_gt, ignore_index=2)
    assert jnp.allclose(out, ref, rtol=1e-5, atol=1e-6), (out, ref)

    print("KERNEL_OK")
</pallas_src>

<mosaic_0001>
module attributes {stable_mosaic.version = 11 : i64} {
  func.func @_masked_bce_kernel(%arg0: i32, %arg1: memref<8x128xf32, #tpu.memory_space<vmem>>, %arg2: memref<8x128xi32, #tpu.memory_space<vmem>>, %arg3: memref<8x128xf32, #tpu.memory_space<vmem>>, %arg4: memref<8x128xf32, #tpu.memory_space<vmem>>) attributes {dimension_semantics = [#tpu.dimension_semantics<arbitrary>], iteration_bounds = array<i64: 1>, scalar_prefetch = 0 : i64, scratch_operands = 0 : i64, tpu.core_type = #tpu.core_type<tc>, window_params = [{transform_indices = @transform_0, window_bounds = array<i64: 8, 128>}, {transform_indices = @transform_1, window_bounds = array<i64: 8, 128>}, {pipeline_mode = #tpu.pipeline_mode<synchronous>, transform_indices = @transform_2, window_bounds = array<i64: 8, 128>}, {pipeline_mode = #tpu.pipeline_mode<synchronous>, transform_indices = @transform_3, window_bounds = array<i64: 8, 128>}]} {
    %c0_i32 = arith.constant 0 : i32
    %0 = arith.cmpi eq, %arg0, %c0_i32 : i32
    %1 = arith.extui %0 : i1 to i32
    %c0_i32_0 = arith.constant 0 : i32
    %2 = arith.cmpi ne, %1, %c0_i32_0 : i32
    scf.if %2 {
      %cst_18 = arith.constant 0.000000e+00 : f32
      %33 = vector.broadcast %cst_18 : f32 to vector<8x128xf32>
      %c0_19 = arith.constant 0 : index
      %c0_20 = arith.constant 0 : index
      %34 = vector.load %arg3[%c0_19, %c0_20] : memref<8x128xf32, #tpu.memory_space<vmem>>, vector<8x128xf32>
      tpu.vector_store %arg3[%c0_19, %c0_20], %33 {strides = array<i32>} : memref<8x128xf32, #tpu.memory_space<vmem>>, vector<8x128xf32>,
      %cst_21 = arith.constant 0.000000e+00 : f32
      %35 = vector.broadcast %cst_21 : f32 to vector<8x128xf32>
      %c0_22 = arith.constant 0 : index
      %c0_23 = arith.constant 0 : index
      %36 = vector.load %arg4[%c0_22, %c0_23] : memref<8x128xf32, #tpu.memory_space<vmem>>, vector<8x128xf32>
      tpu.vector_store %arg4[%c0_22, %c0_23], %35 {strides = array<i32>} : memref<8x128xf32, #tpu.memory_space<vmem>>, vector<8x128xf32>,
    } else {
    }
    %c0 = arith.constant 0 : index
    %c0_1 = arith.constant 0 : index
    %3 = vector.load %arg1[%c0, %c0_1] : memref<8x128xf32, #tpu.memory_space<vmem>>, vector<8x128xf32>
    %c0_2 = arith.constant 0 : index
    %c0_3 = arith.constant 0 : index
    %4 = vector.load %arg2[%c0_2, %c0_3] : memref<8x128xi32, #tpu.memory_space<vmem>>, vector<8x128xi32>
    %5 = arith.sitofp %4 : vector<8x128xi32> to vector<8x128xf32>
    %c2_i32 = arith.constant 2 : i32
    %6 = vector.broadcast %c2_i32 : i32 to vector<8x128xi32>
    %7 = arith.cmpi ne, %4, %6 : vector<8x128xi32>
    %cst = arith.constant 0.000000e+00 : f32
    %8 = vector.broadcast %cst : f32 to vector<8x128xf32>
    %9 = arith.maximumf %3, %8 : vector<8x128xf32>
    %10 = arith.mulf %3, %5 : vector<8x128xf32>
    %11 = arith.subf %9, %10 : vector<8x128xf32>
    %12 = math.absf %3 : vector<8x128xf32>
    %cst_4 = arith.constant 0.000000e+00 : f32
    %13 = vector.broadcast %cst_4 : f32 to vector<8x128xf32>
    %14 = arith.subf %13, %12 : vector<8x128xf32>
    %15 = math.exp %14 : vector<8x128xf32>
    %16 = math.log1p %15 : vector<8x128xf32>
    %17 = arith.addf %11, %16 : vector<8x128xf32>
    %cst_5 = arith.constant 0.000000e+00 : f32
    %18 = vector.broadcast %cst_5 : f32 to vector<8x128xf32>
    %19 = arith.select %7, %17, %18 : vector<8x128xi1>, vector<8x128xf32>
    %20 = vector.shape_cast %19 : vector<8x128xf32> to vector<1x8x128xf32>
    %cst_6 = arith.constant 1.000000e+00 : f32
    %cst_7 = arith.constant 0.000000e+00 : f32
    %21 = vector.broadcast %cst_6 : f32 to vector<8x128xf32>
    %22 = vector.broadcast %cst_7 : f32 to vector<8x128xf32>
    %23 = arith.select %7, %21, %22 : vector<8x128xi1>, vector<8x128xf32>
    %24 = vector.shape_cast %23 : vector<8x128xf32> to vector<1x8x128xf32>
    %c0_8 = arith.constant 0 : index
    %c0_9 = arith.constant 0 : index
    %25 = vector.load %arg3[%c0_8, %c0_9] : memref<8x128xf32, #tpu.memory_space<vmem>>, vector<8x128xf32>
    %cst_10 = arith.constant dense<0.000000e+00> : vector<8x128xf32>
    %26 = vector.multi_reduction <add>, %20, %cst_10 [0] : vector<1x8x128xf32> to vector<8x128xf32>
    %27 = arith.addf %25, %26 : vector<8x128xf32>
    %c0_11 = arith.constant 0 : index
    %c0_12 = arith.constant 0 : index
    %28 = vector.load %arg3[%c0_11, %c0_12] : memref<8x128xf32, #tpu.memory_space<vmem>>, vector<8x128xf32>
    tpu.vector_store %arg3[%c0_11, %c0_12], %27 {strides = array<i32>} : memref<8x128xf32, #tpu.memory_space<vmem>>, vector<8x128xf32>,
    %c0_13 = arith.constant 0 : index
    %c0_14 = arith.constant 0 : index
    %29 = vector.load %arg4[%c0_13, %c0_14] : memref<8x128xf32, #tpu.memory_space<vmem>>, vector<8x128xf32>
    %cst_15 = arith.constant dense<0.000000e+00> : vector<8x128xf32>
    %30 = vector.multi_reduction <add>, %24, %cst_15 [0] : vector<1x8x128xf32> to vector<8x128xf32>
    %31 = arith.addf %29, %30 : vector<8x128xf32>
    %c0_16 = arith.constant 0 : index
    %c0_17 = arith.constant 0 : index
    %32 = vector.load %arg4[%c0_16, %c0_17] : memref<8x128xf32, #tpu.memory_space<vmem>>, vector<8x128xf32>
    tpu.vector_store %arg4[%c0_16, %c0_17], %31 {strides = array<i32>} : memref<8x128xf32, #tpu.memory_space<vmem>>, vector<8x128xf32>,
    return
  }
  func.func @transform_0(%arg0: i32) -> (i32, i32) {
    %c0_i32 = arith.constant 0 : i32
    %c0_i32_0 = arith.constant 0 : i32
    return %arg0, %c0_i32 : i32, i32
  }
  func.func @transform_1(%arg0: i32) -> (i32, i32) {
    %c0_i32 = arith.constant 0 : i32
    %c0_i32_0 = arith.constant 0 : i32
    return %arg0, %c0_i32 : i32, i32
  }
  func.func @transform_2(%arg0: i32) -> (i32, i32) {
    %c0_i32 = arith.constant 0 : i32
    %c0_i32_0 = arith.constant 0 : i32
    %c0_i32_1 = arith.constant 0 : i32
    return %c0_i32, %c0_i32_0 : i32, i32
  }
  func.func @transform_3(%arg0: i32) -> (i32, i32) {
    %c0_i32 = arith.constant 0 : i32
    %c0_i32_0 = arith.constant 0 : i32
    %c0_i32_1 = arith.constant 0 : i32
    return %c0_i32, %c0_i32_0 : i32, i32
  }
}

</mosaic_0001>

<llo_original>
// kernel: tpu_custom_call.1
$region0: #{tpu_custom_call.1}
  #allocation0 [shape = 'u32[]', space=smem, size = 0x4, offset = 0x4, fixed_abs, tag = 'smem constant byte address 0x4 - core index']
  #allocation1 [shape = 'u32[144,128]{1,0:T(1,128)}', space=vmem, size = 0x12000, scoped, tag = 'internal scratch']
  %s0 = inlined_call_operand.hbm [shape: f32[8,128], index: 0, kind: input, shape index: {}]
  %s1 = inlined_call_operand.hbm [shape: s32[8,128], index: 1, kind: input, shape index: {}]
  %s2 = inlined_call_operand.hbm [shape: f32[8,128], index: 2, kind: output, shape index: {0}]
  %s3 = inlined_call_operand.hbm [shape: f32[8,128], index: 3, kind: output, shape index: {1}]
  %4 = xla_tuple %s2, %s3
  %s5 = sld [smem:[#allocation0]]
  $region38: #{tpu_custom_call.1} parent=0
    _
  %s7 = ssub.s32 1, %s5
  %s8 = scalar_select 0, %s7, %s5
  $region1: #{tpu_custom_call.1} parent=0
    #allocation2 [shape = 'u8[4096]{0}', space=vmem, size = 0x1000, scoped, tag = 'input window, operand 0, single buffered']
    #allocation3 [shape = 's32[1]{0}', space=sflag, size = 0x4, scoped, tag = 'scoped memory for tpu_custom_call.1']
    #allocation4 [shape = 's32[1]{0}', space=sflag, size = 0x4, scoped, tag = 'scoped memory for tpu_custom_call.1']
    #allocation5 [shape = 'u8[4096]{0}', space=vmem, size = 0x1000, scoped, tag = 'input window, operand 1, single buffered']
    #allocation6 [shape = 's32[1]{0}', space=sflag, size = 0x4, scoped, tag = 'scoped memory for tpu_custom_call.1']
    #allocation7 [shape = 'u8[4096]{0}', space=vmem, size = 0x1000, scoped, tag = 'output window, operand 0, single buffered']
    #allocation8 [shape = 'u8[4096]{0}', space=vmem, size = 0x1000, scoped, tag = 'output window, operand 1, single buffered']
    #allocation9 [shape = 's32[1]{0}', space=sflag, size = 0x4, scoped, tag = 'scoped memory for tpu_custom_call.1']
    %9 = vsyncpa [#allocation3], 0
    %10 = vsyncpa [#allocation6], 0
    %11 = vsyncpa [#allocation4], 0
    %12 = vsyncpa [#allocation9], 0
    // Predicated region
    $region2: #{tpu_custom_call.1} parent=1 // pred_check
      _
    $region3: #{tpu_custom_call.1} parent=1 // pred_check_branch
      %14 = sbr.rel (0) target = $region5
    $region4: #{tpu_custom_call.1} parent=1 // pred_region
      %s16 = ssub.s32 128, 128
      %17 = vsyncadd [#allocation3], %s16
      %s19 = sshll.u32 [#allocation2], 4
      %s20 = int_to_ptr.vmem [resolvable:$true] %s19
      %22 = dma.hbm_to_vmem [thread:$0]  %s0, 128, %s20, [#allocation3]
    $region5: #{tpu_custom_call.1} parent=1 // pred_fallthru
      _
    // Predicated region
    $region6: #{tpu_custom_call.1} parent=1 // pred_check
      _
    $region7: #{tpu_custom_call.1} parent=1 // pred_check_branch
      %24 = sbr.rel (0) target = $region9
    $region8: #{tpu_custom_call.1} parent=1 // pred_region
      %s26 = ssub.s32 128, 128
      %27 = vsyncadd [#allocation6], %s26
      %s29 = sshll.u32 [#allocation5], 4
      %s30 = int_to_ptr.vmem [resolvable:$true] %s29
      %32 = dma.hbm_to_vmem [thread:$0]  %s1, 128, %s30, [#allocation6]
    $region9: #{tpu_custom_call.1} parent=1 // pred_fallthru
      _
    // Predicated region
    $region10: #{tpu_custom_call.1} parent=1 // pred_check
      _
    $region11: #{tpu_custom_call.1} parent=1 // pred_check_branch
      %34 = sbr.rel (0) target = $region13
    $region12: #{tpu_custom_call.1} parent=1 // pred_region
      %35 = dma.done [#allocation3], 128
    $region13: #{tpu_custom_call.1} parent=1 // pred_fallthru
      _
    // Predicated region
    $region14: #{tpu_custom_call.1} parent=1 // pred_check
      _
    $region15: #{tpu_custom_call.1} parent=1 // pred_check_branch
      %37 = sbr.rel (0) target = $region17
    $region16: #{tpu_custom_call.1} parent=1 // pred_region
      %38 = dma.done [#allocation6], 128
    $region17: #{tpu_custom_call.1} parent=1 // pred_fallthru
      _
    %p39 = scmp.eq.s32.totalorder 0, 0
    // Predicated region
    $region18: #{tpu_custom_call.1} parent=1 // pred_check
      %p40 = pneg %p39
    $region19: #{tpu_custom_call.1} parent=1 // pred_check_branch
      %42 = sbr.rel (%p40) target = $region21
    $region20: #{tpu_custom_call.1} parent=1 // pred_region
      %43 = vst [vmem:[#allocation7] sm:$0xff] 0.0
      %44 = vst [vmem:[#allocation8] sm:$0xff] 0.0
    $region21: #{tpu_custom_call.1} parent=1 // pred_fallthru
      _
    %v45 = vld [vmem:[#allocation2] sm:$0xff]
    %v46 = vld [vmem:[#allocation5] sm:$0xff]
    %v47 = vcvt.s32.f32 %v46
    %vm48 = vcmp.ne.s32.totalorder %v46, 2
    %v49 = vmax.f32 %v45, 0.0
    %v50 = vmul.f32 %v45, %v47
    %v51 = vsub.f32 %v49, %v50
    %v52 = vand.u32 2147483647, %v45
    %v53 = vsub.f32 0.0, %v52
    %v54 = vmul.f32 %v53, 1.442695
    %v55 = vpow.pop %v54
    %v56 = vadd.f32 %v55, 1.0
    %v57 = vlog2.pop %v56
    %v58 = vmul.f32 %v57, 0.6931472
    %v59 = vmul.f32 -0.5, %v55
    %v60 = vadd.f32 %v59, 1.0
    %v61 = vmul.f32 %v60, %v55
    %v62 = vand.u32 2147483647, %v55
    %vm63 = vcmp.lt.f32.partialorder %v62, 0.0004427343
    %v64 = vsel %vm63, %v61, %v58
    %v65 = vadd.f32 %v51, %v64
    %v66 = vsel %vm48, %v65, 0.0
    %v67 = vsel %vm48, 1.0, 0.0
    %v68 = vld [vmem:[#allocation7] sm:$0xff]
    %v69 = vadd.f32 %v66, 0.0
    %v70 = vadd.f32 %v68, %v69
    %71 = vst [vmem:[#allocation7] sm:$0xff] %v70
    %v72 = vld [vmem:[#allocation8] sm:$0xff]
    %v73 = vadd.f32 %v67, 0.0
    %v74 = vadd.f32 %v72, %v73
    %75 = vst [vmem:[#allocation8] sm:$0xff] %v74
    // Predicated region
    $region22: #{tpu_custom_call.1} parent=1 // pred_check
      _
    $region23: #{tpu_custom_call.1} parent=1 // pred_check_branch
      %77 = sbr.rel (0) target = $region25
    $region24: #{tpu_custom_call.1} parent=1 // pred_region
      %s79 = ssub.s32 128, 128
      %80 = vsyncadd [#allocation4], %s79
      %s82 = sshll.u32 [#allocation7], 4
      %s83 = int_to_ptr.vmem [resolvable:$true] %s82
      %85 = dma.vmem_to_hbm [thread:$0]  %s83, 128, %s2, [#allocation4]
    $region25: #{tpu_custom_call.1} parent=1 // pred_fallthru
      _
    // Predicated region
    $region26: #{tpu_custom_call.1} parent=1 // pred_check
      _
    $region27: #{tpu_custom_call.1} parent=1 // pred_check_branch
      %87 = sbr.rel (0) target = $region29
    $region28: #{tpu_custom_call.1} parent=1 // pred_region
      %s89 = ssub.s32 128, 128
      %90 = vsyncadd [#allocation9], %s89
      %s92 = sshll.u32 [#allocation8], 4
      %s93 = int_to_ptr.vmem [resolvable:$true] %s92
      %95 = dma.vmem_to_hbm [thread:$0]  %s93, 128, %s3, [#allocation9]
    $region29: #{tpu_custom_call.1} parent=1 // pred_fallthru
      _
    // Predicated region
    $region30: #{tpu_custom_call.1} parent=1 // pred_check
      _
    $region31: #{tpu_custom_call.1} parent=1 // pred_check_branch
      %97 = sbr.rel (0) target = $region33
    $region32: #{tpu_custom_call.1} parent=1 // pred_region
      %98 = dma.done [#allocation4], 128
    $region33: #{tpu_custom_call.1} parent=1 // pred_fallthru
      _
    // Predicated region
    $region34: #{tpu_custom_call.1} parent=1 // pred_check
      _
    $region35: #{tpu_custom_call.1} parent=1 // pred_check_branch
      %100 = sbr.rel (0) target = $region37
    $region36: #{tpu_custom_call.1} parent=1 // pred_region
      %101 = dma.done [#allocation9], 128
    $region37: #{tpu_custom_call.1} parent=1 // pred_fallthru
      _
    %102 = vsyncpa [#allocation3], 1
    %103 = vsyncpa [#allocation6], 1
    %104 = vsyncpa [#allocation4], 1
    %105 = vsyncpa [#allocation9], 1

</llo_original>
